<compile_context>
chip_gen: v6e
topology: v6e:2x2x1
jax: 0.10.0
libtpu: 0.0.40
codegen_flags: <defaults>
</compile_context>

<pallas_src>
import jax
import jax.numpy as jnp
from jax.experimental import pallas as pl
from jax.experimental.pallas import tpu as pltpu

D_IN, D_H1, D_H2, D_OUT = 100, 64, 32, 100
LANE = 128      # lane-dense padded width for hidden / weight tiles
TB_MAX = 2048   # batch tile cap (rows); ~2 MiB of double-buffered VMEM


def mlp_kernel(x_ref, w1_ref, w2_ref, w3_ref, b_ref, o_ref):
    # Layer 1: (TB, 100) @ (100, 128) -> (TB, 128). Unaligned K=100 is handled
    # by Mosaic (MXU operand padding is zero-filled), so no explicit pad op.
    h = jnp.dot(x_ref[...], w1_ref[...], preferred_element_type=jnp.float32)
    h = jnp.maximum(h + b_ref[0:1, :], 0.0).astype(jnp.bfloat16)

    # Layer 2: dense 128x128 (padding columns of h are exact zeros).
    h = jnp.dot(h, w2_ref[...], preferred_element_type=jnp.float32)
    h = jnp.maximum(h + b_ref[1:2, :], 0.0).astype(jnp.bfloat16)

    # Layer 3 (no activation); store only the 100 valid output lanes.
    h = jnp.dot(h, w3_ref[...], preferred_element_type=jnp.float32)
    h = h + b_ref[2:3, :]
    o_ref[...] = h[:, :D_OUT].astype(o_ref.dtype)


def prepare_params(params):
    """One-time glue (outside the hot path): transpose torch-style [out, in]
    weights to [in, out], zero-pad the output lanes to 128, and pack the three
    biases into one (3, 128) f32 array."""
    w1, b1, w2, b2, w3, b3 = params

    def pad_wt(w, k_rows):  # [out, in] -> [k_rows, 128] transposed, zero-padded
        wt = jnp.transpose(w)  # [in, out]
        return (jnp.zeros((k_rows, LANE), wt.dtype)
                .at[: wt.shape[0], : wt.shape[1]].set(wt))

    def pad_b(b):  # [out] -> [128] f32, zero-padded
        return jnp.zeros((LANE,), jnp.float32).at[: b.shape[0]].set(
            b.astype(jnp.float32))

    w1p = pad_wt(w1, D_IN)   # (100, 128): keep true K, pad only the N lanes
    w2p = pad_wt(w2, LANE)   # (128, 128)
    w3p = pad_wt(w3, LANE)   # (128, 128)
    b_all = jnp.stack([pad_b(b1), pad_b(b2), pad_b(b3)])  # (3, 128) f32
    return (w1p, w2p, w3p, b_all)


def _round_up(n, m):
    return ((n + m - 1) // m) * m


def _choose_tb(batch):
    """Batch tile: large (amortize per-step overhead), multiple of 16 (bf16
    sublane packing), and >=2 grid steps for splittable batches so v7x's two
    TensorCores both get work on the 'parallel' grid axis."""
    tb = min(TB_MAX, _round_up(batch, 16))
    if tb >= 32 and pl.cdiv(batch, tb) < 2:
        tb = max(16, _round_up(pl.cdiv(batch, 2), 16))
    return tb


def mock_model_forward(x, prepared):
    """x: [B, 100] bf16. prepared: output of prepare_params.
    Returns ([B, 100] bf16, {}) — same contract as MockModel.forward."""
    w1p, w2p, w3p, b_all = prepared
    B = x.shape[0]
    tb = _choose_tb(B)
    grid = (pl.cdiv(B, tb),)

    wspec_full = pl.BlockSpec((LANE, LANE), lambda i: (0, 0))  # resident weights
    out = pl.pallas_call(
        mlp_kernel,
        out_shape=jax.ShapeDtypeStruct((B, D_OUT), jnp.bfloat16),
        grid=grid,
        in_specs=[
            pl.BlockSpec((tb, D_IN), lambda i: (i, 0)),    # x rows stream
            pl.BlockSpec((D_IN, LANE), lambda i: (0, 0)),  # w1 (100, 128)
            wspec_full,                                    # w2 (128, 128)
            wspec_full,                                    # w3 (128, 128)
            pl.BlockSpec((3, LANE), lambda i: (0, 0)),     # packed f32 biases
        ],
        out_specs=pl.BlockSpec((tb, D_OUT), lambda i: (i, 0)),
        compiler_params=pltpu.CompilerParams(dimension_semantics=("parallel",)),
    )(x, w1p, w2p, w3p, b_all)
    return out, {}


def init_params(key):
    """Deterministic init matching torch.nn.Linear shapes, cast to bf16."""
    ks = jax.random.split(key, 6)

    def linear_init(kw, kb, fan_in, fan_out):
        bound = 1.0 / jnp.sqrt(fan_in)
        w = jax.random.uniform(kw, (fan_out, fan_in), jnp.float32, -bound, bound)
        b = jax.random.uniform(kb, (fan_out,), jnp.float32, -bound, bound)
        return w.astype(jnp.bfloat16), b.astype(jnp.bfloat16)

    w1, b1 = linear_init(ks[0], ks[1], D_IN, D_H1)
    w2, b2 = linear_init(ks[2], ks[3], D_H1, D_H2)
    w3, b3 = linear_init(ks[4], ks[5], D_H2, D_OUT)
    return (w1, b1, w2, b2, w3, b3)


if __name__ == "__main__":
    key = jax.random.PRNGKey(0)
    k_param, k_x = jax.random.split(key)
    params = init_params(k_param)
    prepared = prepare_params(params)  # transpose + pad + pack once, off hot path

    B = 16
    x = jax.random.normal(k_x, (B, D_IN), jnp.float32).astype(jnp.bfloat16)

    fwd = jax.jit(mock_model_forward)
    out, state = fwd(x, prepared)
    out = jax.block_until_ready(out)

    assert out.shape == (B, D_OUT)
    assert out.dtype == jnp.bfloat16
    assert isinstance(state, dict) and len(state) == 0

    # Reference: same bf16-weight / f32-accumulate pipeline in pure JAX.
    w1, b1, w2, b2, w3, b3 = params
    h = jnp.maximum(
        jnp.dot(x, w1.T, preferred_element_type=jnp.float32) + b1.astype(jnp.float32), 0.0
    ).astype(jnp.bfloat16)
    h = jnp.maximum(
        jnp.dot(h, w2.T, preferred_element_type=jnp.float32) + b2.astype(jnp.float32), 0.0
    ).astype(jnp.bfloat16)
    ref = (
        jnp.dot(h, w3.T, preferred_element_type=jnp.float32) + b3.astype(jnp.float32)
    ).astype(jnp.bfloat16)
    assert jnp.allclose(out.astype(jnp.float32), ref.astype(jnp.float32),
                        atol=2e-2, rtol=2e-2)

    # TODO(synk): MockModel.backward / optimizer step is training-side and not
    # translated here (forward-only kernel).
    print("KERNEL_OK")
</pallas_src>

<mosaic_0001>
module attributes {stable_mosaic.version = 11 : i64} {
  func.func @mlp_kernel(%arg0: i32, %arg1: memref<16x100xbf16, #tpu.memory_space<vmem>>, %arg2: memref<100x128xbf16, #tpu.memory_space<vmem>>, %arg3: memref<128x128xbf16, #tpu.memory_space<vmem>>, %arg4: memref<128x128xbf16, #tpu.memory_space<vmem>>, %arg5: memref<3x128xf32, #tpu.memory_space<vmem>>, %arg6: memref<16x100xbf16, #tpu.memory_space<vmem>>) attributes {dimension_semantics = [#tpu.dimension_semantics<parallel>], iteration_bounds = array<i64: 1>, scalar_prefetch = 0 : i64, scratch_operands = 0 : i64, tpu.core_type = #tpu.core_type<tc>, window_params = [{transform_indices = @transform_0, window_bounds = array<i64: 16, 100>}, {pipeline_mode = #tpu.pipeline_mode<synchronous>, transform_indices = @transform_1, window_bounds = array<i64: 100, 128>}, {pipeline_mode = #tpu.pipeline_mode<synchronous>, transform_indices = @transform_2, window_bounds = array<i64: 128, 128>}, {pipeline_mode = #tpu.pipeline_mode<synchronous>, transform_indices = @transform_3, window_bounds = array<i64: 128, 128>}, {pipeline_mode = #tpu.pipeline_mode<synchronous>, transform_indices = @transform_4, window_bounds = array<i64: 3, 128>}, {transform_indices = @transform_5, window_bounds = array<i64: 16, 100>}]} {
    %c0 = arith.constant 0 : index
    %c0_0 = arith.constant 0 : index
    %0 = vector.load %arg1[%c0, %c0_0] : memref<16x100xbf16, #tpu.memory_space<vmem>>, vector<16x100xbf16>
    %c0_1 = arith.constant 0 : index
    %c0_2 = arith.constant 0 : index
    %1 = vector.load %arg2[%c0_1, %c0_2] : memref<100x128xbf16, #tpu.memory_space<vmem>>, vector<100x128xbf16>
    %cst = arith.constant dense<0.000000e+00> : vector<16x128xf32>
    %2 = tpu.matmul %0, %1, %cst {dimension_numbers = #tpu.dot_dimension_numbers<[1], [0], [0], [1], [0, 0, 1, 1], [], []>} : vector<16x100xbf16>, vector<100x128xbf16>, vector<16x128xf32> -> vector<16x128xf32>
    %c0_3 = arith.constant 0 : index
    %c0_4 = arith.constant 0 : index
    %3 = vector.load %arg5[%c0_3, %c0_4] : memref<3x128xf32, #tpu.memory_space<vmem>>, vector<1x128xf32>
    %4 = vector.broadcast %3 : vector<1x128xf32> to vector<16x128xf32>
    %5 = arith.addf %2, %4 : vector<16x128xf32>
    %cst_5 = arith.constant 0.000000e+00 : f32
    %6 = vector.broadcast %cst_5 : f32 to vector<16x128xf32>
    %7 = arith.maximumf %5, %6 : vector<16x128xf32>
    %8 = arith.truncf %7 : vector<16x128xf32> to vector<16x128xbf16>
    %c0_6 = arith.constant 0 : index
    %c0_7 = arith.constant 0 : index
    %9 = vector.load %arg3[%c0_6, %c0_7] : memref<128x128xbf16, #tpu.memory_space<vmem>>, vector<128x128xbf16>
    %cst_8 = arith.constant dense<0.000000e+00> : vector<16x128xf32>
    %10 = tpu.matmul %8, %9, %cst_8 {dimension_numbers = #tpu.dot_dimension_numbers<[1], [0], [0], [1], [0, 0, 1, 1], [], []>} : vector<16x128xbf16>, vector<128x128xbf16>, vector<16x128xf32> -> vector<16x128xf32>
    %c1 = arith.constant 1 : index
    %c0_9 = arith.constant 0 : index
    %11 = vector.load %arg5[%c1, %c0_9] : memref<3x128xf32, #tpu.memory_space<vmem>>, vector<1x128xf32>
    %12 = vector.broadcast %11 : vector<1x128xf32> to vector<16x128xf32>
    %13 = arith.addf %10, %12 : vector<16x128xf32>
    %cst_10 = arith.constant 0.000000e+00 : f32
    %14 = vector.broadcast %cst_10 : f32 to vector<16x128xf32>
    %15 = arith.maximumf %13, %14 : vector<16x128xf32>
    %16 = arith.truncf %15 : vector<16x128xf32> to vector<16x128xbf16>
    %c0_11 = arith.constant 0 : index
    %c0_12 = arith.constant 0 : index
    %17 = vector.load %arg4[%c0_11, %c0_12] : memref<128x128xbf16, #tpu.memory_space<vmem>>, vector<128x128xbf16>
    %cst_13 = arith.constant dense<0.000000e+00> : vector<16x128xf32>
    %18 = tpu.matmul %16, %17, %cst_13 {dimension_numbers = #tpu.dot_dimension_numbers<[1], [0], [0], [1], [0, 0, 1, 1], [], []>} : vector<16x128xbf16>, vector<128x128xbf16>, vector<16x128xf32> -> vector<16x128xf32>
    %c2 = arith.constant 2 : index
    %c0_14 = arith.constant 0 : index
    %19 = vector.load %arg5[%c2, %c0_14] : memref<3x128xf32, #tpu.memory_space<vmem>>, vector<1x128xf32>
    %20 = vector.broadcast %19 : vector<1x128xf32> to vector<16x128xf32>
    %21 = arith.addf %18, %20 : vector<16x128xf32>
    %22 = vector.extract_strided_slice %21 {offsets = [0, 0], sizes = [16, 100], strides = [1, 1]} : vector<16x128xf32> to vector<16x100xf32>
    %23 = arith.truncf %22 : vector<16x100xf32> to vector<16x100xbf16>
    %c0_15 = arith.constant 0 : index
    %c0_16 = arith.constant 0 : index
    %24 = vector.load %arg6[%c0_15, %c0_16] : memref<16x100xbf16, #tpu.memory_space<vmem>>, vector<16x100xbf16>
    tpu.vector_store %arg6[%c0_15, %c0_16], %23 {strides = array<i32>} : memref<16x100xbf16, #tpu.memory_space<vmem>>, vector<16x100xbf16>,
    return
  }
  func.func @transform_0(%arg0: i32) -> (i32, i32) {
    %c0_i32 = arith.constant 0 : i32
    %c0_i32_0 = arith.constant 0 : i32
    return %arg0, %c0_i32 : i32, i32
  }
  func.func @transform_1(%arg0: i32) -> (i32, i32) {
    %c0_i32 = arith.constant 0 : i32
    %c0_i32_0 = arith.constant 0 : i32
    %c0_i32_1 = arith.constant 0 : i32
    return %c0_i32, %c0_i32_0 : i32, i32
  }
  func.func @transform_2(%arg0: i32) -> (i32, i32) {
    %c0_i32 = arith.constant 0 : i32
    %c0_i32_0 = arith.constant 0 : i32
    %c0_i32_1 = arith.constant 0 : i32
    return %c0_i32, %c0_i32_0 : i32, i32
  }
  func.func @transform_3(%arg0: i32) -> (i32, i32) {
    %c0_i32 = arith.constant 0 : i32
    %c0_i32_0 = arith.constant 0 : i32
    %c0_i32_1 = arith.constant 0 : i32
    return %c0_i32, %c0_i32_0 : i32, i32
  }
  func.func @transform_4(%arg0: i32) -> (i32, i32) {
    %c0_i32 = arith.constant 0 : i32
    %c0_i32_0 = arith.constant 0 : i32
    %c0_i32_1 = arith.constant 0 : i32
    return %c0_i32, %c0_i32_0 : i32, i32
  }
  func.func @transform_5(%arg0: i32) -> (i32, i32) {
    %c0_i32 = arith.constant 0 : i32
    %c0_i32_0 = arith.constant 0 : i32
    return %arg0, %c0_i32 : i32, i32
  }
}

</mosaic_0001>

<llo_original>
// kernel: mock_model_forward.1
$region0: #{mock_model_forward.1}
  #allocation0 [shape = 'u32[]', space=smem, size = 0x4, offset = 0x4, fixed_abs, tag = 'smem constant byte address 0x4 - core index']
  #allocation1 [shape = 'u32[144,128]{1,0:T(1,128)}', space=vmem, size = 0x12000, scoped, tag = 'internal scratch']
  %s0 = inlined_call_operand.hbm [shape: bf16[16,100], index: 0, kind: input, shape index: {}]
  %s1 = inlined_call_operand.hbm [shape: bf16[100,128], index: 1, kind: input, shape index: {}]
  %s2 = inlined_call_operand.hbm [shape: bf16[128,128], index: 2, kind: input, shape index: {}]
  %s3 = inlined_call_operand.hbm [shape: bf16[128,128], index: 3, kind: input, shape index: {}]
  %s4 = inlined_call_operand.vmem [shape: f32[3,128], index: 4, kind: input, shape index: {}]
  %s5 = inlined_call_operand.hbm [shape: bf16[16,100], index: 5, kind: output, shape index: {}]
  %s6 = sld [smem:[#allocation0]]
  $region46: #{mock_model_forward.1} parent=0
    _
  %s8 = ssub.s32 1, %s6
  %s9 = scalar_select 0, %s8, %s6
  $region1: #{mock_model_forward.1} parent=0
    #allocation2 [shape = 'u8[4096]{0}', space=vmem, size = 0x1000, scoped, tag = 'input window, operand 0, single buffered']
    #allocation3 [shape = 's32[1]{0}', space=sflag, size = 0x4, scoped, tag = 'scoped memory for mock_model_forward.1']
    #allocation4 [shape = 's32[1]{0}', space=sflag, size = 0x4, scoped, tag = 'scoped memory for mock_model_forward.1']
    #allocation5 [shape = 'u8[26624]{0}', space=vmem, size = 0x6800, scoped, tag = 'input window, operand 1, single buffered']
    #allocation6 [shape = 's32[1]{0}', space=sflag, size = 0x4, scoped, tag = 'scoped memory for mock_model_forward.1']
    #allocation7 [shape = 'u8[32768]{0}', space=vmem, size = 0x8000, scoped, tag = 'input window, operand 2, single buffered']
    #allocation8 [shape = 'u8[32768]{0}', space=vmem, size = 0x8000, scoped, tag = 'input window, operand 3, single buffered']
    #allocation9 [shape = 's32[1]{0}', space=sflag, size = 0x4, scoped, tag = 'scoped memory for mock_model_forward.1']
    #allocation10 [shape = 'u8[4096]{0}', space=vmem, size = 0x1000, scoped, tag = 'output window, operand 0, single buffered']
    %10 = vsyncpa [#allocation3], 0
    %11 = vsyncpa [#allocation6], 0
    %12 = vsyncpa [#allocation9], 0
    %13 = vsyncpa [#allocation4], 0
    // Predicated region
    $region2: #{mock_model_forward.1} parent=1 // pred_check
      _
    $region3: #{mock_model_forward.1} parent=1 // pred_check_branch
      %15 = sbr.rel (0) target = $region5
    $region4: #{mock_model_forward.1} parent=1 // pred_region
      %s17 = ssub.s32 128, 128
      %18 = vsyncadd [#allocation3], %s17
      %s19 = sshll.u32 [#allocation2], 4
      %s20 = int_to_ptr.vmem [resolvable:$true] %s19
      %25 = dma.hbm_to_vmem [thread:$0]  %s0, 128, %s20, [#allocation3], 64, 64, 4
    $region5: #{mock_model_forward.1} parent=1 // pred_fallthru
      _
    // Predicated region
    $region6: #{mock_model_forward.1} parent=1 // pred_check
      _
    $region7: #{mock_model_forward.1} parent=1 // pred_check_branch
      %27 = sbr.rel (0) target = $region9
    $region8: #{mock_model_forward.1} parent=1 // pred_region
      %s29 = ssub.s32 832, 832
      %30 = vsyncadd [#allocation6], %s29
      %s31 = sshll.u32 [#allocation5], 4
      %s32 = int_to_ptr.vmem [resolvable:$true] %s31
      %37 = dma.hbm_to_vmem [thread:$0]  %s1, 832, %s32, [#allocation6], 64, 64, 4
    $region9: #{mock_model_forward.1} parent=1 // pred_fallthru
      _
    // Predicated region
    $region10: #{mock_model_forward.1} parent=1 // pred_check
      _
    $region11: #{mock_model_forward.1} parent=1 // pred_check_branch
      %39 = sbr.rel (0) target = $region13
    $region12: #{mock_model_forward.1} parent=1 // pred_region
      %s41 = ssub.s32 1024, 1024
      %42 = vsyncadd [#allocation6], %s41
      %s43 = sshll.u32 [#allocation7], 4
      %s44 = int_to_ptr.vmem [resolvable:$true] %s43
      %49 = dma.hbm_to_vmem [thread:$0]  %s2, 1024, %s44, [#allocation6], 64, 64, 4
    $region13: #{mock_model_forward.1} parent=1 // pred_fallthru
      _
    // Predicated region
    $region14: #{mock_model_forward.1} parent=1 // pred_check
      _
    $region15: #{mock_model_forward.1} parent=1 // pred_check_branch
      %51 = sbr.rel (0) target = $region17
    $region16: #{mock_model_forward.1} parent=1 // pred_region
      %s53 = ssub.s32 1024, 1024
      %54 = vsyncadd [#allocation9], %s53
      %s55 = sshll.u32 [#allocation8], 4
      %s56 = int_to_ptr.vmem [resolvable:$true] %s55
      %61 = dma.hbm_to_vmem [thread:$0]  %s3, 1024, %s56, [#allocation9], 64, 64, 4
    $region17: #{mock_model_forward.1} parent=1 // pred_fallthru
      _
    // Predicated region
    $region18: #{mock_model_forward.1} parent=1 // pred_check
      _
    $region19: #{mock_model_forward.1} parent=1 // pred_check_branch
      %63 = sbr.rel (0) target = $region21
    $region20: #{mock_model_forward.1} parent=1 // pred_region
      _
    $region21: #{mock_model_forward.1} parent=1 // pred_fallthru
      _
    // Predicated region
    $region22: #{mock_model_forward.1} parent=1 // pred_check
      _
    $region23: #{mock_model_forward.1} parent=1 // pred_check_branch
      %65 = sbr.rel (0) target = $region25
    $region24: #{mock_model_forward.1} parent=1 // pred_region
      %66 = dma.done [#allocation3], 128
    $region25: #{mock_model_forward.1} parent=1 // pred_fallthru
      _
    // Predicated region
    $region26: #{mock_model_forward.1} parent=1 // pred_check
      _
    $region27: #{mock_model_forward.1} parent=1 // pred_check_branch
      %68 = sbr.rel (0) target = $region29
    $region28: #{mock_model_forward.1} parent=1 // pred_region
      %69 = dma.done [#allocation6], 832
    $region29: #{mock_model_forward.1} parent=1 // pred_fallthru
      _
    // Predicated region
    $region30: #{mock_model_forward.1} parent=1 // pred_check
      _
    $region31: #{mock_model_forward.1} parent=1 // pred_check_branch
      %71 = sbr.rel (0) target = $region33
    $region32: #{mock_model_forward.1} parent=1 // pred_region
      %72 = dma.done [#allocation6], 1024
    $region33: #{mock_model_forward.1} parent=1 // pred_fallthru
      _
    // Predicated region
    $region34: #{mock_model_forward.1} parent=1 // pred_check
      _
    $region35: #{mock_model_forward.1} parent=1 // pred_check_branch
      %74 = sbr.rel (0) target = $region37
    $region36: #{mock_model_forward.1} parent=1 // pred_region
      %75 = dma.done [#allocation9], 1024
    $region37: #{mock_model_forward.1} parent=1 // pred_fallthru
      _
    %v77 = vld [vmem:[#allocation2] sm:$0xf]
    %v78 = vld [vmem:[#allocation2 + $0x4] sm:$0xf]
    %v79 = vld [vmem:[#allocation5] sm:$0xf]
    %v80 = vld [vmem:[#allocation5 + $0x4] sm:$0xf]
    %v81 = vld [vmem:[#allocation5 + $0x8] sm:$0xf]
    %v82 = vld [vmem:[#allocation5 + $0xc] sm:$0xf]
    %v83 = vld [vmem:[#allocation5 + $0x10] sm:$0xf]
    %v84 = vld [vmem:[#allocation5 + $0x14] sm:$0xf]
    %v85 = vld [vmem:[#allocation5 + $0x18] sm:$0xf]
    %v86 = vld [vmem:[#allocation5 + $0x1c] sm:$0xf]
    %v87 = vld [vmem:[#allocation5 + $0x20] sm:$0xf]
    %v88 = vld [vmem:[#allocation5 + $0x24] sm:$0xf]
    %v89 = vld [vmem:[#allocation5 + $0x28] sm:$0xf]
    %v90 = vld [vmem:[#allocation5 + $0x2c] sm:$0xf]
    %v91 = vld [vmem:[#allocation5 + $0x30] sm:$0x3]
    %v92 = vld [vmem:[%s4] sm:$0x1]
    %v93 = vlaneseq
    %v94 = vshrl.u32 %v93, 7
    %v95 = vsub.s32 0, %v94
    %v96 = vrot.slane %v92, %v95
    %v99 = vunpack.c.l.b16 %v77
    %v100 = vunpack.c.l.b16 %v78
    %v101 = vpack.c.b16 %v100, %v99
    %v115 = vunpack.c.l.b16 %v79
    %v116 = vunpack.c.l.b16 %v80
    %v117 = vunpack.c.l.b16 %v81
    %v118 = vunpack.c.l.b16 %v82
    %v119 = vunpack.c.l.b16 %v83
    %v120 = vunpack.c.l.b16 %v84
    %v121 = vunpack.c.l.b16 %v85
    %v122 = vunpack.c.l.b16 %v86
    %v123 = vunpack.c.l.b16 %v87
    %v124 = vunpack.c.l.b16 %v88
    %v125 = vunpack.c.l.b16 %v89
    %v126 = vunpack.c.l.b16 %v90
    %v127 = vunpack.c.l.b16 %v91
    %v128 = vpack.c.b16 %v116, %v115
    %v129 = vpack.c.b16 %v118, %v117
    %v130 = vpack.c.b16 %v120, %v119
    %v131 = vpack.c.b16 %v122, %v121
    %v132 = vpack.c.b16 %v124, %v123
    %v133 = vpack.c.b16 %v126, %v125
    %v134 = vpack.c.b16 %v127, %v127
    %vm141 = vcmask 818176
    %v143 = vsel %vm141, %v101, 0
    %vm145 = vcmask 1041408
    %v147 = vsel %vm145, %v134, 0
    %149 = vmatprep.subr.bf16.mxu0 0
    %150 = vmatpush1.bf16.msra.mxu0 0
    %151 = vmatprep.subr.bf16.mxu0 0
    %152 = vmatpush1.bf16.msra.mxu0 %v147
    %153 = vmatprep.subr.bf16.mxu0 0
    %154 = vmatpush1.bf16.msra.mxu0 %v133
    %155 = vmatprep.subr.bf16.mxu0 0
    %156 = vmatpush1.bf16.msra.mxu0 %v132
    %157 = vmatprep.subr.bf16.mxu0 0
    %158 = vmatpush1.bf16.msra.mxu0 %v131
    %159 = vmatprep.subr.bf16.mxu0 0
    %160 = vmatpush1.bf16.msra.mxu0 %v130
    %161 = vmatprep.subr.bf16.mxu0 0
    %162 = vmatpush1.bf16.msra.mxu0 %v129
    %163 = vmatprep.subr.bf16.mxu0 0
    %164 = vmatpush1.bf16.msra.mxu0 %v128
    %165 = vmatprep.subr.bf16.mxu0 0
    %166 = vmatpush2.bf16.msra.mxu0 0
    %167 = vmatprep.subr.bf16.mxu0 0
    %168 = vmatpush2.bf16.msra.mxu0 0
    %169 = vmatprep.subr.bf16.mxu0 0
    %170 = vmatpush2.bf16.msra.mxu0 0
    %171 = vmatprep.subr.bf16.mxu0 0
    %172 = vmatpush2.bf16.msra.mxu0 0
    %173 = vmatprep.subr.bf16.mxu0 0
    %174 = vmatpush2.bf16.msra.mxu0 0
    %175 = vmatprep.subr.bf16.mxu0 0
    %176 = vmatpush2.bf16.msra.mxu0 0
    %177 = vmatprep.subr.bf16.mxu0 0
    %178 = vmatpush2.bf16.msra.mxu0 0
    %179 = vmatprep.subr.bf16.mxu0 0
    %180 = vmatpush2.bf16.msra.mxu0 0
    %181 = vmatprep.mubr.bf16.mxu0 0
    %182 = vmatmul.mubr.bf16.gmra.mxu0 %v143
    %v183 = vpop.f32.mrf.mxu0
    %v184 = vadd.f32 %v96, %v183
    %v185 = vpop.f32.mrf.mxu0
    %v186 = vpop.f32.mrf.mxu0
    %v187 = vadd.f32 %v96, %v186
    %v188 = vpop.f32.mrf.mxu0
    %189 = vdwg.mxu0
    %v190 = vmax.f32 %v184, 0.0
    %v191 = vmax.f32 %v187, 0.0
    %v192 = vpack.c.bf16 %v191, %v190
    %v193 = vld [vmem:[#allocation7] sm:$0xf]
    %v194 = vld [vmem:[#allocation7 + $0x4] sm:$0xf]
    %v195 = vld [vmem:[#allocation7 + $0x8] sm:$0xf]
    %v196 = vld [vmem:[#allocation7 + $0xc] sm:$0xf]
    %v197 = vld [vmem:[#allocation7 + $0x10] sm:$0xf]
    %v198 = vld [vmem:[#allocation7 + $0x14] sm:$0xf]
    %v199 = vld [vmem:[#allocation7 + $0x18] sm:$0xf]
    %v200 = vld [vmem:[#allocation7 + $0x1c] sm:$0xf]
    %v201 = vld [vmem:[#allocation7 + $0x20] sm:$0xf]
    %v202 = vld [vmem:[#allocation7 + $0x24] sm:$0xf]
    %v203 = vld [vmem:[#allocation7 + $0x28] sm:$0xf]
    %v204 = vld [vmem:[#allocation7 + $0x2c] sm:$0xf]
    %v205 = vld [vmem:[#allocation7 + $0x30] sm:$0xf]
    %v206 = vld [vmem:[#allocation7 + $0x34] sm:$0xf]
    %v207 = vld [vmem:[#allocation7 + $0x38] sm:$0xf]
    %v208 = vld [vmem:[#allocation7 + $0x3c] sm:$0xf]
    %v209 = vld [vmem:[%s4 + $0x1] sm:$0x1]
    %v210 = vlaneseq
    %v211 = vshrl.u32 %v210, 7
    %v212 = vsub.s32 0, %v211
    %v213 = vrot.slane %v209, %v212
    %v230 = vunpack.c.l.b16 %v193
    %v231 = vunpack.c.l.b16 %v194
    %v232 = vunpack.c.l.b16 %v195
    %v233 = vunpack.c.l.b16 %v196
    %v234 = vunpack.c.l.b16 %v197
    %v235 = vunpack.c.l.b16 %v198
    %v236 = vunpack.c.l.b16 %v199
    %v237 = vunpack.c.l.b16 %v200
    %v238 = vunpack.c.l.b16 %v201
    %v239 = vunpack.c.l.b16 %v202
    %v240 = vunpack.c.l.b16 %v203
    %v241 = vunpack.c.l.b16 %v204
    %v242 = vunpack.c.l.b16 %v205
    %v243 = vunpack.c.l.b16 %v206
    %v244 = vunpack.c.l.b16 %v207
    %v245 = vunpack.c.l.b16 %v208
    %v246 = vpack.c.b16 %v231, %v230
    %v247 = vpack.c.b16 %v233, %v232
    %v248 = vpack.c.b16 %v235, %v234
    %v249 = vpack.c.b16 %v237, %v236
    %v250 = vpack.c.b16 %v239, %v238
    %v251 = vpack.c.b16 %v241, %v240
    %v252 = vpack.c.b16 %v243, %v242
    %v253 = vpack.c.b16 %v245, %v244
    %262 = vmatprep.subr.bf16.mxu0 0
    %263 = vmatpush1.bf16.msra.mxu0 %v253
    %264 = vmatprep.subr.bf16.mxu0 0
    %265 = vmatpush1.bf16.msra.mxu0 %v252
    %266 = vmatprep.subr.bf16.mxu0 0
    %267 = vmatpush1.bf16.msra.mxu0 %v251
    %268 = vmatprep.subr.bf16.mxu0 0
    %269 = vmatpush1.bf16.msra.mxu0 %v250
    %270 = vmatprep.subr.bf16.mxu0 0
    %271 = vmatpush1.bf16.msra.mxu0 %v249
    %272 = vmatprep.subr.bf16.mxu0 0
    %273 = vmatpush1.bf16.msra.mxu0 %v248
    %274 = vmatprep.subr.bf16.mxu0 0
    %275 = vmatpush1.bf16.msra.mxu0 %v247
    %276 = vmatprep.subr.bf16.mxu0 0
    %277 = vmatpush1.bf16.msra.mxu0 %v246
    %278 = vmatprep.subr.bf16.mxu0 0
    %279 = vmatpush2.bf16.msra.mxu0 0
    %280 = vmatprep.subr.bf16.mxu0 0
    %281 = vmatpush2.bf16.msra.mxu0 0
    %282 = vmatprep.subr.bf16.mxu0 0
    %283 = vmatpush2.bf16.msra.mxu0 0
    %284 = vmatprep.subr.bf16.mxu0 0
    %285 = vmatpush2.bf16.msra.mxu0 0
    %286 = vmatprep.subr.bf16.mxu0 0
    %287 = vmatpush2.bf16.msra.mxu0 0
    %288 = vmatprep.subr.bf16.mxu0 0
    %289 = vmatpush2.bf16.msra.mxu0 0
    %290 = vmatprep.subr.bf16.mxu0 0
    %291 = vmatpush2.bf16.msra.mxu0 0
    %292 = vmatprep.subr.bf16.mxu0 0
    %293 = vmatpush2.bf16.msra.mxu0 0
    %294 = vmatprep.mubr.bf16.mxu0 0
    %295 = vmatmul.mubr.bf16.gmra.mxu0 %v192
    %v296 = vpop.f32.mrf.mxu0
    %v297 = vadd.f32 %v213, %v296
    %v298 = vpop.f32.mrf.mxu0
    %v299 = vpop.f32.mrf.mxu0
    %v300 = vadd.f32 %v213, %v299
    %v301 = vpop.f32.mrf.mxu0
    %302 = vdwg.mxu0
    %v303 = vmax.f32 %v297, 0.0
    %v304 = vmax.f32 %v300, 0.0
    %v305 = vpack.c.bf16 %v304, %v303
    %v306 = vld [vmem:[#allocation8] sm:$0xf]
    %v307 = vld [vmem:[#allocation8 + $0x4] sm:$0xf]
    %v308 = vld [vmem:[#allocation8 + $0x8] sm:$0xf]
    %v309 = vld [vmem:[#allocation8 + $0xc] sm:$0xf]
    %v310 = vld [vmem:[#allocation8 + $0x10] sm:$0xf]
    %v311 = vld [vmem:[#allocation8 + $0x14] sm:$0xf]
    %v312 = vld [vmem:[#allocation8 + $0x18] sm:$0xf]
    %v313 = vld [vmem:[#allocation8 + $0x1c] sm:$0xf]
    %v314 = vld [vmem:[#allocation8 + $0x20] sm:$0xf]
    %v315 = vld [vmem:[#allocation8 + $0x24] sm:$0xf]
    %v316 = vld [vmem:[#allocation8 + $0x28] sm:$0xf]
    %v317 = vld [vmem:[#allocation8 + $0x2c] sm:$0xf]
    %v318 = vld [vmem:[#allocation8 + $0x30] sm:$0xf]
    %v319 = vld [vmem:[#allocation8 + $0x34] sm:$0xf]
    %v320 = vld [vmem:[#allocation8 + $0x38] sm:$0xf]
    %v321 = vld [vmem:[#allocation8 + $0x3c] sm:$0xf]
    %v322 = vld [vmem:[%s4 + $0x2] sm:$0x1]
    %v323 = vlaneseq
    %v324 = vshrl.u32 %v323, 7
    %v325 = vsub.s32 0, %v324
    %v326 = vrot.slane %v322, %v325
    %v343 = vunpack.c.l.b16 %v306
    %v344 = vunpack.c.l.b16 %v307
    %v345 = vunpack.c.l.b16 %v308
    %v346 = vunpack.c.l.b16 %v309
    %v347 = vunpack.c.l.b16 %v310
    %v348 = vunpack.c.l.b16 %v311
    %v349 = vunpack.c.l.b16 %v312
    %v350 = vunpack.c.l.b16 %v313
    %v351 = vunpack.c.l.b16 %v314
    %v352 = vunpack.c.l.b16 %v315
    %v353 = vunpack.c.l.b16 %v316
    %v354 = vunpack.c.l.b16 %v317
    %v355 = vunpack.c.l.b16 %v318
    %v356 = vunpack.c.l.b16 %v319
    %v357 = vunpack.c.l.b16 %v320
    %v358 = vunpack.c.l.b16 %v321
    %v359 = vpack.c.b16 %v344, %v343
    %v360 = vpack.c.b16 %v346, %v345
    %v361 = vpack.c.b16 %v348, %v347
    %v362 = vpack.c.b16 %v350, %v349
    %v363 = vpack.c.b16 %v352, %v351
    %v364 = vpack.c.b16 %v354, %v353
    %v365 = vpack.c.b16 %v356, %v355
    %v366 = vpack.c.b16 %v358, %v357
    %375 = vmatprep.subr.bf16.mxu0 0
    %376 = vmatpush1.bf16.msra.mxu0 %v366
    %377 = vmatprep.subr.bf16.mxu0 0
    %378 = vmatpush1.bf16.msra.mxu0 %v365
    %379 = vmatprep.subr.bf16.mxu0 0
    %380 = vmatpush1.bf16.msra.mxu0 %v364
    %381 = vmatprep.subr.bf16.mxu0 0
    %382 = vmatpush1.bf16.msra.mxu0 %v363
    %383 = vmatprep.subr.bf16.mxu0 0
    %384 = vmatpush1.bf16.msra.mxu0 %v362
    %385 = vmatprep.subr.bf16.mxu0 0
    %386 = vmatpush1.bf16.msra.mxu0 %v361
    %387 = vmatprep.subr.bf16.mxu0 0
    %388 = vmatpush1.bf16.msra.mxu0 %v360
    %389 = vmatprep.subr.bf16.mxu0 0
    %390 = vmatpush1.bf16.msra.mxu0 %v359
    %391 = vmatprep.subr.bf16.mxu0 0
    %392 = vmatpush2.bf16.msra.mxu0 0
    %393 = vmatprep.subr.bf16.mxu0 0
    %394 = vmatpush2.bf16.msra.mxu0 0
    %395 = vmatprep.subr.bf16.mxu0 0
    %396 = vmatpush2.bf16.msra.mxu0 0
    %397 = vmatprep.subr.bf16.mxu0 0
    %398 = vmatpush2.bf16.msra.mxu0 0
    %399 = vmatprep.subr.bf16.mxu0 0
    %400 = vmatpush2.bf16.msra.mxu0 0
    %401 = vmatprep.subr.bf16.mxu0 0
    %402 = vmatpush2.bf16.msra.mxu0 0
    %403 = vmatprep.subr.bf16.mxu0 0
    %404 = vmatpush2.bf16.msra.mxu0 0
    %405 = vmatprep.subr.bf16.mxu0 0
    %406 = vmatpush2.bf16.msra.mxu0 0
    %407 = vmatprep.mubr.bf16.mxu0 0
    %408 = vmatmul.mubr.bf16.gmra.mxu0 %v305
    %v409 = vpop.f32.mrf.mxu0
    %v410 = vadd.f32 %v326, %v409
    %v411 = vpop.f32.mrf.mxu0
    %v412 = vpop.f32.mrf.mxu0
    %v413 = vadd.f32 %v326, %v412
    %v414 = vpop.f32.mrf.mxu0
    %415 = vdwg.mxu0
    %v416 = vpack.c.bf16 %v413, %v410
    %v418 = vunpack.c.l.b16 %v416
    %v419 = vunpack.c.h.b16 %v416
    %v420 = vpack.c.b16 %v418, %v418
    %v421 = vpack.c.b16 %v419, %v419
    %vm424 = vcmask 814080
    %425 = vst.msk [vmem:[#allocation10] sm:$0xf] %vm424, %v420
    %426 = vst.msk [vmem:[#allocation10 + $0x4] sm:$0xf] %vm424, %v421
    // Predicated region
    $region38: #{mock_model_forward.1} parent=1 // pred_check
      _
    $region39: #{mock_model_forward.1} parent=1 // pred_check_branch
      %428 = sbr.rel (0) target = $region41
    $region40: #{mock_model_forward.1} parent=1 // pred_region
      %s430 = ssub.s32 128, 128
      %431 = vsyncadd [#allocation4], %s430
      %s432 = sshll.u32 [#allocation10], 4
      %s433 = int_to_ptr.vmem [resolvable:$true] %s432
      %438 = dma.vmem_to_hbm [thread:$0]  %s433, 128, %s5, [#allocation4], 64, 64, 4
    $region41: #{mock_model_forward.1} parent=1 // pred_fallthru
      _
    // Predicated region
    $region42: #{mock_model_forward.1} parent=1 // pred_check
      _
    $region43: #{mock_model_forward.1} parent=1 // pred_check_branch
      %440 = sbr.rel (0) target = $region45
    $region44: #{mock_model_forward.1} parent=1 // pred_region
      %441 = dma.done [#allocation4], 128
    $region45: #{mock_model_forward.1} parent=1 // pred_fallthru
      _
    %442 = vsyncpa [#allocation3], 1
    %443 = vsyncpa [#allocation6], 1
    %444 = vsyncpa [#allocation9], 1
    %445 = vsyncpa [#allocation4], 1

</llo_original>
